<compile_context>
chip_gen: v7x
topology: tpu7x:2x2x1
jax: 0.10.0
libtpu: 0.0.40
codegen_flags: <defaults>
</compile_context>

<pallas_src>
import functools

import jax
import jax.numpy as jnp
import numpy as np
from jax.experimental import pallas as pl
from jax.experimental.pallas import tpu as pltpu


# ---------------------------------------------------------------------------
# Pallas kernel: R dense matmuls (conv) + single-pass BatchNorm + ReLU, fused.
# Layout: channels on sublanes, output pixels on lanes (lane-dense).
# ---------------------------------------------------------------------------
def _decoding_block_kernel(lhs_ref, w_ref, g_ref, b_ref, o_ref, *, R, M_sub, eps):
    # lhs_ref : (R, Ksub, M_sub)  bf16  im2col patches (one group per output phase)
    # w_ref   : (R, Cout, Ksub)   bf16  sub-kernel slabs
    # g_ref   : (Cout, 1) f32, b_ref : (Cout, 1) f32   BatchNorm gamma / beta
    # o_ref   : (Cout, R*M_sub) f32    normalized + ReLU'd output (phase-major)

    # Conv: R small MXU matmuls, f32 accumulation, results kept in vregs.
    accs = [jnp.dot(w_ref[r], lhs_ref[r], preferred_element_type=jnp.float32)
            for r in range(R)]                                   # each (Cout, M_sub)

    # BatchNorm2d (training) statistics in ONE pass: per-channel sum and sum-of-squares
    # over all N*OH*OW pixels (channel axis = sublanes, reduction over lanes).
    s1 = accs[0].sum(axis=1, keepdims=True)
    s2 = (accs[0] * accs[0]).sum(axis=1, keepdims=True)
    for a in accs[1:]:
        s1 = s1 + a.sum(axis=1, keepdims=True)
        s2 = s2 + (a * a).sum(axis=1, keepdims=True)
    inv_m = 1.0 / float(R * M_sub)
    mean = s1 * inv_m                                             # (Cout, 1)
    var = jnp.maximum(s2 * inv_m - mean * mean, 0.0)              # biased variance, f32
    scale = g_ref[...] * jax.lax.rsqrt(var + eps)                 # (Cout, 1)
    shift = b_ref[...] - mean * scale                             # (Cout, 1)

    # Dropout2d(p=0) == identity, then affine BN + ReLU; lane-dense stores.
    for r in range(R):
        o_ref[:, r * M_sub:(r + 1) * M_sub] = jnp.maximum(accs[r] * scale + shift, 0.0)


# ---------------------------------------------------------------------------
# Wrapper: NCHW in / NCHW out (matches the PyTorch module interface).
# Builds the sub-pixel im2col in plain JAX (trace-time static geometry).
# ---------------------------------------------------------------------------
def decoding_block_forward(x_nchw, weight, gamma, beta,
                           stride, padding, output_padding,
                           eps=1e-5, compute_dtype=jnp.bfloat16):
    N, Cin, H, W = x_nchw.shape
    _, Cout, KH, KW = weight.shape
    s, p, op = stride, padding, output_padding
    OH = (H - 1) * s - 2 * p + KH + op
    OW = (W - 1) * s - 2 * p + KW + op

    # --- choose formulation ------------------------------------------------
    if s > 1 and OH % s == 0 and OW % s == 0:
        se, xs = s, x_nchw                       # sub-pixel decomposition (fast path)
    else:
        # Fallback (rarely hit): zero-dilate once, then it's a stride-1 transposed conv.
        se = 1
        Hd, Wd = (H - 1) * s + 1, (W - 1) * s + 1
        xs = jnp.zeros((N, Cin, Hd, Wd), x_nchw.dtype).at[:, :, ::s, ::s].set(x_nchw)
    Hh, Ww = xs.shape[2], xs.shape[3]

    Jh, Jw = -(-KH // se), -(-KW // se)          # taps per phase (padded to max)
    OHs, OWs = OH // se, OW // se                # output sub-grid per phase
    R = se * se
    Ksub = Jh * Jw * Cin
    M_sub = N * OHs * OWs

    def _axis_geom(Ksize, r):
        o_min = (r - p) % se                     # first output index of this phase
        m0 = (o_min + p - r) // se               # first sub-grid position (>= 0, exact)
        j_valid = max(0, -(-(Ksize - r) // se))  # number of real taps for this phase
        return m0, j_valid

    m0h, jvh = zip(*[_axis_geom(KH, r) for r in range(se)])
    m0w, jvw = zip(*[_axis_geom(KW, r) for r in range(se)])
    pad_t = max(0, max(jvh[r] - 1 - m0h[r] for r in range(se)))
    pad_b = max(0, max(m0h[r] + OHs - Hh for r in range(se)))
    pad_l = max(0, max(jvw[r] - 1 - m0w[r] for r in range(se)))
    pad_r = max(0, max(m0w[r] + OWs - Ww for r in range(se)))
    xp = jnp.pad(xs, ((0, 0), (0, 0), (pad_t, pad_b), (pad_l, pad_r)))

    # --- im2col (per output phase) ------------------------------------------
    lhs_parts, w_parts = [], []
    for rh in range(se):
        for rw in range(se):
            taps_x, taps_w = [], []
            for jh in range(Jh):
                for jw in range(Jw):
                    kh, kw = rh + se * jh, rw + se * jw
                    if kh < KH and kw < KW:
                        h0 = pad_t + m0h[rh] - jh
                        w0 = pad_l + m0w[rw] - jw
                        wk = weight[:, :, kh, kw]                  # (Cin, Cout)
                    else:                                          # padded tap: zero weight
                        h0 = pad_t + m0h[rh]
                        w0 = pad_l + m0w[rw]
                        wk = jnp.zeros((Cin, Cout), weight.dtype)
                    taps_x.append(xp[:, :, h0:h0 + OHs, w0:w0 + OWs])  # (N,Cin,OHs,OWs)
                    taps_w.append(wk)
            lhs_r = jnp.stack(taps_x, axis=0)                      # (T, N, Cin, OHs, OWs)
            lhs_r = jnp.transpose(lhs_r, (0, 2, 1, 3, 4)).reshape(Ksub, M_sub)
            w_r = jnp.stack(taps_w, axis=0)                        # (T, Cin, Cout)
            w_r = jnp.transpose(w_r, (2, 0, 1)).reshape(Cout, Ksub)
            lhs_parts.append(lhs_r)
            w_parts.append(w_r)

    lhs = jnp.stack(lhs_parts).astype(compute_dtype)               # (R, Ksub, M_sub)
    wmat = jnp.stack(w_parts).astype(compute_dtype)                # (R, Cout, Ksub)
    g2 = gamma.reshape(Cout, 1).astype(jnp.float32)
    b2 = beta.reshape(Cout, 1).astype(jnp.float32)

    kernel = functools.partial(_decoding_block_kernel, R=R, M_sub=M_sub, eps=eps)
    out_flat = pl.pallas_call(
        kernel,
        out_shape=jax.ShapeDtypeStruct((Cout, R * M_sub), jnp.float32),
        grid=(1,),
        in_specs=[
            pl.BlockSpec((R, Ksub, M_sub), lambda i: (0, 0, 0)),
            pl.BlockSpec((R, Cout, Ksub), lambda i: (0, 0, 0)),
            pl.BlockSpec((Cout, 1), lambda i: (0, 0)),
            pl.BlockSpec((Cout, 1), lambda i: (0, 0)),
        ],
        out_specs=pl.BlockSpec((Cout, R * M_sub), lambda i: (0, 0)),
        compiler_params=pltpu.CompilerParams(dimension_semantics=("arbitrary",)),
    )(lhs, wmat, g2, b2)

    # --- interleave the se*se output phases back to NCHW --------------------
    y = out_flat.reshape(Cout, se, se, N, OHs, OWs)                # (co, rh, rw, n, qh, qw)
    perm = [(a + p) % se for a in range(se)]                       # phase rh hosting oh%se == a
    y = y[:, perm][:, :, perm]                                     # (co, ah, aw, n, qh, qw)
    out = jnp.transpose(y, (3, 0, 4, 1, 5, 2)).reshape(N, Cout, OH, OW)
    return out


# ---------------------------------------------------------------------------
# Pure-JAX reference (direct PyTorch ConvTranspose2d definition + BN + ReLU).
# ---------------------------------------------------------------------------
def reference_forward(x, weight, gamma, beta, stride, padding, output_padding, eps=1e-5):
    N, Cin, H, W = x.shape
    _, Cout, KH, KW = weight.shape
    s, p, op = stride, padding, output_padding
    full_h = (H - 1) * s + KH + op
    full_w = (W - 1) * s + KW + op
    out = jnp.zeros((N, Cout, full_h, full_w), jnp.float32)
    for kh in range(KH):
        for kw in range(KW):
            contrib = jnp.einsum('ncij,co->noij', x, weight[:, :, kh, kw])
            out = out.at[:, :, kh:kh + (H - 1) * s + 1:s,
                         kw:kw + (W - 1) * s + 1:s].add(contrib)
    OH = (H - 1) * s - 2 * p + KH + op
    OW = (W - 1) * s - 2 * p + KW + op
    out = out[:, :, p:p + OH, p:p + OW]
    mean = out.mean(axis=(0, 2, 3), keepdims=True)
    var = jnp.square(out - mean).mean(axis=(0, 2, 3), keepdims=True)
    y = (out - mean) * jax.lax.rsqrt(var + eps) * gamma.reshape(1, -1, 1, 1) \
        + beta.reshape(1, -1, 1, 1)
    return jnp.maximum(y, 0.0)


if __name__ == "__main__":
    # deconv_params = (in_channel, out_channel, kernel_size, stride, padding, output_padding)
    in_ch, out_ch, ksize, stride, padding, out_pad = 4, 8, 4, 2, 1, 0
    drop_prob = 0.0  # Dropout2d(p=0) == identity

    key = jax.random.PRNGKey(0)
    kx, kw_, kg, kb = jax.random.split(key, 4)
    x = jax.random.normal(kx, (2, in_ch, 16, 16), jnp.float32)                 # NCHW
    weight = 0.1 * jax.random.normal(kw_, (in_ch, out_ch, ksize, ksize), jnp.float32)
    gamma = 1.0 + 0.1 * jax.random.normal(kg, (out_ch,), jnp.float32)
    beta = 0.05 * jax.random.normal(kb, (out_ch,), jnp.float32)

    fwd = jax.jit(functools.partial(decoding_block_forward,
                                    stride=stride, padding=padding,
                                    output_padding=out_pad))
    out = jax.block_until_ready(fwd(x, weight, gamma, beta))

    ref = jax.block_until_ready(
        reference_forward(x, weight, gamma, beta, stride, padding, out_pad))

    assert out.shape == (2, out_ch, 32, 32), out.shape
    err = float(np.max(np.abs(np.asarray(out) - np.asarray(ref))))
    # bf16 MXU inputs with f32 accumulation vs the all-f32 reference: allow a few 1e-2 abs
    # deviation on O(1) post-BatchNorm outputs (f32 `compute_dtype` reproduces it exactly).
    assert err < 3e-2, f"max abs err = {err}"
    print("KERNEL_OK")
</pallas_src>

<mosaic_0001>
module attributes {stable_mosaic.version = 11 : i64} {
  func.func @_decoding_block_kernel(%arg0: i32, %arg1: memref<4x16x512xbf16, #tpu.memory_space<vmem>>, %arg2: memref<4x8x16xbf16, #tpu.memory_space<vmem>>, %arg3: memref<8x1xf32, #tpu.memory_space<vmem>>, %arg4: memref<8x1xf32, #tpu.memory_space<vmem>>, %arg5: memref<8x2048xf32, #tpu.memory_space<vmem>>) attributes {dimension_semantics = [#tpu.dimension_semantics<arbitrary>], iteration_bounds = array<i64: 1>, scalar_prefetch = 0 : i64, scratch_operands = 0 : i64, tpu.core_type = #tpu.core_type<tc>, window_params = [{pipeline_mode = #tpu.pipeline_mode<synchronous>, transform_indices = @transform_0, window_bounds = array<i64: 4, 16, 512>}, {pipeline_mode = #tpu.pipeline_mode<synchronous>, transform_indices = @transform_1, window_bounds = array<i64: 4, 8, 16>}, {pipeline_mode = #tpu.pipeline_mode<synchronous>, transform_indices = @transform_2, window_bounds = array<i64: 8, 1>}, {pipeline_mode = #tpu.pipeline_mode<synchronous>, transform_indices = @transform_3, window_bounds = array<i64: 8, 1>}, {pipeline_mode = #tpu.pipeline_mode<synchronous>, transform_indices = @transform_4, window_bounds = array<i64: 8, 2048>}]} {
    %c0 = arith.constant 0 : index
    %c0_0 = arith.constant 0 : index
    %c0_1 = arith.constant 0 : index
    %0 = vector.load %arg2[%c0, %c0_0, %c0_1] : memref<4x8x16xbf16, #tpu.memory_space<vmem>>, vector<1x8x16xbf16>
    %1 = vector.shape_cast %0 : vector<1x8x16xbf16> to vector<8x16xbf16>
    %c0_2 = arith.constant 0 : index
    %c0_3 = arith.constant 0 : index
    %c0_4 = arith.constant 0 : index
    %2 = vector.load %arg1[%c0_2, %c0_3, %c0_4] : memref<4x16x512xbf16, #tpu.memory_space<vmem>>, vector<1x16x512xbf16>
    %3 = vector.shape_cast %2 : vector<1x16x512xbf16> to vector<16x512xbf16>
    %cst = arith.constant dense<0.000000e+00> : vector<8x512xf32>
    %4 = tpu.matmul %1, %3, %cst {dimension_numbers = #tpu.dot_dimension_numbers<[1], [0], [0], [1], [0, 0, 1, 1], [], []>} : vector<8x16xbf16>, vector<16x512xbf16>, vector<8x512xf32> -> vector<8x512xf32>
    %c1 = arith.constant 1 : index
    %c0_5 = arith.constant 0 : index
    %c0_6 = arith.constant 0 : index
    %5 = vector.load %arg2[%c1, %c0_5, %c0_6] : memref<4x8x16xbf16, #tpu.memory_space<vmem>>, vector<1x8x16xbf16>
    %6 = vector.shape_cast %5 : vector<1x8x16xbf16> to vector<8x16xbf16>
    %c1_7 = arith.constant 1 : index
    %c0_8 = arith.constant 0 : index
    %c0_9 = arith.constant 0 : index
    %7 = vector.load %arg1[%c1_7, %c0_8, %c0_9] : memref<4x16x512xbf16, #tpu.memory_space<vmem>>, vector<1x16x512xbf16>
    %8 = vector.shape_cast %7 : vector<1x16x512xbf16> to vector<16x512xbf16>
    %cst_10 = arith.constant dense<0.000000e+00> : vector<8x512xf32>
    %9 = tpu.matmul %6, %8, %cst_10 {dimension_numbers = #tpu.dot_dimension_numbers<[1], [0], [0], [1], [0, 0, 1, 1], [], []>} : vector<8x16xbf16>, vector<16x512xbf16>, vector<8x512xf32> -> vector<8x512xf32>
    %c2 = arith.constant 2 : index
    %c0_11 = arith.constant 0 : index
    %c0_12 = arith.constant 0 : index
    %10 = vector.load %arg2[%c2, %c0_11, %c0_12] : memref<4x8x16xbf16, #tpu.memory_space<vmem>>, vector<1x8x16xbf16>
    %11 = vector.shape_cast %10 : vector<1x8x16xbf16> to vector<8x16xbf16>
    %c2_13 = arith.constant 2 : index
    %c0_14 = arith.constant 0 : index
    %c0_15 = arith.constant 0 : index
    %12 = vector.load %arg1[%c2_13, %c0_14, %c0_15] : memref<4x16x512xbf16, #tpu.memory_space<vmem>>, vector<1x16x512xbf16>
    %13 = vector.shape_cast %12 : vector<1x16x512xbf16> to vector<16x512xbf16>
    %cst_16 = arith.constant dense<0.000000e+00> : vector<8x512xf32>
    %14 = tpu.matmul %11, %13, %cst_16 {dimension_numbers = #tpu.dot_dimension_numbers<[1], [0], [0], [1], [0, 0, 1, 1], [], []>} : vector<8x16xbf16>, vector<16x512xbf16>, vector<8x512xf32> -> vector<8x512xf32>
    %c3 = arith.constant 3 : index
    %c0_17 = arith.constant 0 : index
    %c0_18 = arith.constant 0 : index
    %15 = vector.load %arg2[%c3, %c0_17, %c0_18] : memref<4x8x16xbf16, #tpu.memory_space<vmem>>, vector<1x8x16xbf16>
    %16 = vector.shape_cast %15 : vector<1x8x16xbf16> to vector<8x16xbf16>
    %c3_19 = arith.constant 3 : index
    %c0_20 = arith.constant 0 : index
    %c0_21 = arith.constant 0 : index
    %17 = vector.load %arg1[%c3_19, %c0_20, %c0_21] : memref<4x16x512xbf16, #tpu.memory_space<vmem>>, vector<1x16x512xbf16>
    %18 = vector.shape_cast %17 : vector<1x16x512xbf16> to vector<16x512xbf16>
    %cst_22 = arith.constant dense<0.000000e+00> : vector<8x512xf32>
    %19 = tpu.matmul %16, %18, %cst_22 {dimension_numbers = #tpu.dot_dimension_numbers<[1], [0], [0], [1], [0, 0, 1, 1], [], []>} : vector<8x16xbf16>, vector<16x512xbf16>, vector<8x512xf32> -> vector<8x512xf32>
    %cst_23 = arith.constant dense<0.000000e+00> : vector<8xf32>
    %20 = vector.multi_reduction <add>, %4, %cst_23 [1] : vector<8x512xf32> to vector<8xf32>
    %21 = vector.shape_cast %20 : vector<8xf32> to vector<8x1xf32>
    %22 = arith.mulf %4, %4 : vector<8x512xf32>
    %cst_24 = arith.constant dense<0.000000e+00> : vector<8xf32>
    %23 = vector.multi_reduction <add>, %22, %cst_24 [1] : vector<8x512xf32> to vector<8xf32>
    %24 = vector.shape_cast %23 : vector<8xf32> to vector<8x1xf32>
    %cst_25 = arith.constant dense<0.000000e+00> : vector<8xf32>
    %25 = vector.multi_reduction <add>, %9, %cst_25 [1] : vector<8x512xf32> to vector<8xf32>
    %26 = vector.shape_cast %25 : vector<8xf32> to vector<8x1xf32>
    %27 = arith.addf %21, %26 : vector<8x1xf32>
    %28 = arith.mulf %9, %9 : vector<8x512xf32>
    %cst_26 = arith.constant dense<0.000000e+00> : vector<8xf32>
    %29 = vector.multi_reduction <add>, %28, %cst_26 [1] : vector<8x512xf32> to vector<8xf32>
    %30 = vector.shape_cast %29 : vector<8xf32> to vector<8x1xf32>
    %31 = arith.addf %24, %30 : vector<8x1xf32>
    %cst_27 = arith.constant dense<0.000000e+00> : vector<8xf32>
    %32 = vector.multi_reduction <add>, %14, %cst_27 [1] : vector<8x512xf32> to vector<8xf32>
    %33 = vector.shape_cast %32 : vector<8xf32> to vector<8x1xf32>
    %34 = arith.addf %27, %33 : vector<8x1xf32>
    %35 = arith.mulf %14, %14 : vector<8x512xf32>
    %cst_28 = arith.constant dense<0.000000e+00> : vector<8xf32>
    %36 = vector.multi_reduction <add>, %35, %cst_28 [1] : vector<8x512xf32> to vector<8xf32>
    %37 = vector.shape_cast %36 : vector<8xf32> to vector<8x1xf32>
    %38 = arith.addf %31, %37 : vector<8x1xf32>
    %cst_29 = arith.constant dense<0.000000e+00> : vector<8xf32>
    %39 = vector.multi_reduction <add>, %19, %cst_29 [1] : vector<8x512xf32> to vector<8xf32>
    %40 = vector.shape_cast %39 : vector<8xf32> to vector<8x1xf32>
    %41 = arith.addf %34, %40 : vector<8x1xf32>
    %42 = arith.mulf %19, %19 : vector<8x512xf32>
    %cst_30 = arith.constant dense<0.000000e+00> : vector<8xf32>
    %43 = vector.multi_reduction <add>, %42, %cst_30 [1] : vector<8x512xf32> to vector<8xf32>
    %44 = vector.shape_cast %43 : vector<8xf32> to vector<8x1xf32>
    %45 = arith.addf %38, %44 : vector<8x1xf32>
    %cst_31 = arith.constant 4.8828125E-4 : f32
    %46 = vector.broadcast %cst_31 : f32 to vector<8x1xf32>
    %47 = arith.mulf %41, %46 : vector<8x1xf32>
    %cst_32 = arith.constant 4.8828125E-4 : f32
    %48 = vector.broadcast %cst_32 : f32 to vector<8x1xf32>
    %49 = arith.mulf %45, %48 : vector<8x1xf32>
    %50 = arith.mulf %47, %47 : vector<8x1xf32>
    %51 = arith.subf %49, %50 : vector<8x1xf32>
    %cst_33 = arith.constant 0.000000e+00 : f32
    %52 = vector.broadcast %cst_33 : f32 to vector<8x1xf32>
    %53 = arith.maximumf %51, %52 : vector<8x1xf32>
    %c0_34 = arith.constant 0 : index
    %c0_35 = arith.constant 0 : index
    %54 = vector.load %arg3[%c0_34, %c0_35] : memref<8x1xf32, #tpu.memory_space<vmem>>, vector<8x1xf32>
    %cst_36 = arith.constant 9.99999974E-6 : f32
    %55 = vector.broadcast %cst_36 : f32 to vector<8x1xf32>
    %56 = arith.addf %53, %55 : vector<8x1xf32>
    %57 = math.rsqrt %56 : vector<8x1xf32>
    %58 = arith.mulf %54, %57 : vector<8x1xf32>
    %c0_37 = arith.constant 0 : index
    %c0_38 = arith.constant 0 : index
    %59 = vector.load %arg4[%c0_37, %c0_38] : memref<8x1xf32, #tpu.memory_space<vmem>>, vector<8x1xf32>
    %60 = arith.mulf %47, %58 : vector<8x1xf32>
    %61 = arith.subf %59, %60 : vector<8x1xf32>
    %62 = vector.broadcast %58 : vector<8x1xf32> to vector<8x512xf32>
    %63 = arith.mulf %4, %62 : vector<8x512xf32>
    %64 = vector.broadcast %61 : vector<8x1xf32> to vector<8x512xf32>
    %65 = arith.addf %63, %64 : vector<8x512xf32>
    %cst_39 = arith.constant 0.000000e+00 : f32
    %66 = vector.broadcast %cst_39 : f32 to vector<8x512xf32>
    %67 = arith.maximumf %65, %66 : vector<8x512xf32>
    %c0_40 = arith.constant 0 : index
    %c0_41 = arith.constant 0 : index
    %68 = vector.load %arg5[%c0_40, %c0_41] : memref<8x2048xf32, #tpu.memory_space<vmem>>, vector<8x512xf32>
    tpu.vector_store %arg5[%c0_40, %c0_41], %67 {strides = array<i32>} : memref<8x2048xf32, #tpu.memory_space<vmem>>, vector<8x512xf32>,
    %69 = vector.broadcast %58 : vector<8x1xf32> to vector<8x512xf32>
    %70 = arith.mulf %9, %69 : vector<8x512xf32>
    %71 = vector.broadcast %61 : vector<8x1xf32> to vector<8x512xf32>
    %72 = arith.addf %70, %71 : vector<8x512xf32>
    %cst_42 = arith.constant 0.000000e+00 : f32
    %73 = vector.broadcast %cst_42 : f32 to vector<8x512xf32>
    %74 = arith.maximumf %72, %73 : vector<8x512xf32>
    %c0_43 = arith.constant 0 : index
    %c512 = arith.constant 512 : index
    %75 = vector.load %arg5[%c0_43, %c512] : memref<8x2048xf32, #tpu.memory_space<vmem>>, vector<8x512xf32>
    tpu.vector_store %arg5[%c0_43, %c512], %74 {strides = array<i32>} : memref<8x2048xf32, #tpu.memory_space<vmem>>, vector<8x512xf32>,
    %76 = vector.broadcast %58 : vector<8x1xf32> to vector<8x512xf32>
    %77 = arith.mulf %14, %76 : vector<8x512xf32>
    %78 = vector.broadcast %61 : vector<8x1xf32> to vector<8x512xf32>
    %79 = arith.addf %77, %78 : vector<8x512xf32>
    %cst_44 = arith.constant 0.000000e+00 : f32
    %80 = vector.broadcast %cst_44 : f32 to vector<8x512xf32>
    %81 = arith.maximumf %79, %80 : vector<8x512xf32>
    %c0_45 = arith.constant 0 : index
    %c1024 = arith.constant 1024 : index
    %82 = vector.load %arg5[%c0_45, %c1024] : memref<8x2048xf32, #tpu.memory_space<vmem>>, vector<8x512xf32>
    tpu.vector_store %arg5[%c0_45, %c1024], %81 {strides = array<i32>} : memref<8x2048xf32, #tpu.memory_space<vmem>>, vector<8x512xf32>,
    %83 = vector.broadcast %58 : vector<8x1xf32> to vector<8x512xf32>
    %84 = arith.mulf %19, %83 : vector<8x512xf32>
    %85 = vector.broadcast %61 : vector<8x1xf32> to vector<8x512xf32>
    %86 = arith.addf %84, %85 : vector<8x512xf32>
    %cst_46 = arith.constant 0.000000e+00 : f32
    %87 = vector.broadcast %cst_46 : f32 to vector<8x512xf32>
    %88 = arith.maximumf %86, %87 : vector<8x512xf32>
    %c0_47 = arith.constant 0 : index
    %c1536 = arith.constant 1536 : index
    %89 = vector.load %arg5[%c0_47, %c1536] : memref<8x2048xf32, #tpu.memory_space<vmem>>, vector<8x512xf32>
    tpu.vector_store %arg5[%c0_47, %c1536], %88 {strides = array<i32>} : memref<8x2048xf32, #tpu.memory_space<vmem>>, vector<8x512xf32>,
    return
  }
  func.func @transform_0(%arg0: i32) -> (i32, i32, i32) {
    %c0_i32 = arith.constant 0 : i32
    %c0_i32_0 = arith.constant 0 : i32
    %c0_i32_1 = arith.constant 0 : i32
    %c0_i32_2 = arith.constant 0 : i32
    return %c0_i32, %c0_i32_0, %c0_i32_1 : i32, i32, i32
  }
  func.func @transform_1(%arg0: i32) -> (i32, i32, i32) {
    %c0_i32 = arith.constant 0 : i32
    %c0_i32_0 = arith.constant 0 : i32
    %c0_i32_1 = arith.constant 0 : i32
    %c0_i32_2 = arith.constant 0 : i32
    return %c0_i32, %c0_i32_0, %c0_i32_1 : i32, i32, i32
  }
  func.func @transform_2(%arg0: i32) -> (i32, i32) {
    %c0_i32 = arith.constant 0 : i32
    %c0_i32_0 = arith.constant 0 : i32
    %c0_i32_1 = arith.constant 0 : i32
    return %c0_i32, %c0_i32_0 : i32, i32
  }
  func.func @transform_3(%arg0: i32) -> (i32, i32) {
    %c0_i32 = arith.constant 0 : i32
    %c0_i32_0 = arith.constant 0 : i32
    %c0_i32_1 = arith.constant 0 : i32
    return %c0_i32, %c0_i32_0 : i32, i32
  }
  func.func @transform_4(%arg0: i32) -> (i32, i32) {
    %c0_i32 = arith.constant 0 : i32
    %c0_i32_0 = arith.constant 0 : i32
    %c0_i32_1 = arith.constant 0 : i32
    return %c0_i32, %c0_i32_0 : i32, i32
  }
}

</mosaic_0001>

<llo_original>
// kernel: decoding_block_forward.1
$region0: #{decoding_block_forward.1}
  #allocation0 [shape = 'u32[]', space=smem, size = 0x4, offset = 0x4, fixed_abs, tag = 'smem constant byte address 0x4 - core index']
  #allocation1 [shape = 'u32[144,128]{1,0:T(1,128)}', space=vmem, size = 0x12000, scoped, tag = 'internal scratch']
  %s0 = inlined_call_operand.vmem [shape: bf16[4,16,512], index: 0, kind: input, shape index: {}]
  %s1 = inlined_call_operand.vmem [shape: bf16[4,8,16], index: 1, kind: input, shape index: {}]
  %s2 = inlined_call_operand.vmem [shape: f32[8,1], index: 2, kind: input, shape index: {}]
  %s3 = inlined_call_operand.vmem [shape: f32[8,1], index: 3, kind: input, shape index: {}]
  %s4 = inlined_call_operand.vmem [shape: f32[8,2048], index: 4, kind: output, shape index: {}]
  %s5 = sld [smem:[#allocation0]]
  $region26: #{decoding_block_forward.1} parent=0
    _
  %s7 = ssub.s32 1, %s5
  %s8 = scalar_select 0, %s7, %s5
  // Predicated region
  $region2: #{decoding_block_forward.1} parent=0 // pred_check
    _
  $region3: #{decoding_block_forward.1} parent=0 // pred_check_branch
    %10 = sbr.rel (0) target = $region5
  $region4: #{decoding_block_forward.1} parent=0 // pred_region
    _
  $region5: #{decoding_block_forward.1} parent=0 // pred_fallthru
    _
  // Predicated region
  $region6: #{decoding_block_forward.1} parent=0 // pred_check
    _
  $region7: #{decoding_block_forward.1} parent=0 // pred_check_branch
    %12 = sbr.rel (0) target = $region9
  $region8: #{decoding_block_forward.1} parent=0 // pred_region
    _
  $region9: #{decoding_block_forward.1} parent=0 // pred_fallthru
    _
  // Predicated region
  $region10: #{decoding_block_forward.1} parent=0 // pred_check
    _
  $region11: #{decoding_block_forward.1} parent=0 // pred_check_branch
    %14 = sbr.rel (0) target = $region13
  $region12: #{decoding_block_forward.1} parent=0 // pred_region
    _
  $region13: #{decoding_block_forward.1} parent=0 // pred_fallthru
    _
  // Predicated region
  $region14: #{decoding_block_forward.1} parent=0 // pred_check
    _
  $region15: #{decoding_block_forward.1} parent=0 // pred_check_branch
    %16 = sbr.rel (0) target = $region17
  $region16: #{decoding_block_forward.1} parent=0 // pred_region
    _
  $region17: #{decoding_block_forward.1} parent=0 // pred_fallthru
    _
  %v18 = vld [vmem:[%s1] sm:$0xf]
  %v19 = vld [vmem:[%s0] sm:$0xff]
  %v20 = vld [vmem:[%s0 + $0x8] sm:$0xff]
  %v21 = vld [vmem:[%s0 + $0x10] sm:$0xff]
  %v22 = vld [vmem:[%s0 + $0x18] sm:$0xff]
  %v27 = vunpack.c.l.b16 %v19
  %v28 = vunpack.c.h.b16 %v19
  %v29 = vunpack.c.l.b16 %v20
  %v30 = vunpack.c.h.b16 %v20
  %v31 = vunpack.c.l.b16 %v21
  %v32 = vunpack.c.h.b16 %v21
  %v33 = vunpack.c.l.b16 %v22
  %v34 = vunpack.c.h.b16 %v22
  %v35 = vpack.c.b16 %v31, %v27
  %v36 = vpack.c.b16 %v32, %v28
  %v37 = vpack.c.b16 %v33, %v29
  %v38 = vpack.c.b16 %v34, %v30
  %vm43 = vcmask 130048
  %v45 = vsel %vm43, %v18, 0
  %47 = vmatprep.subr.bf16.mxu0 %v36
  %48 = vmatpush1.bf16.msra.mxu0 %v35
  %49 = vmatprep.subr.bf16.mxu0 0
  %50 = vmatpush1.bf16.msra.mxu0 0
  %51 = vmatprep.subr.bf16.mxu0 0
  %52 = vmatpush1.bf16.msra.mxu0 0
  %53 = vmatprep.subr.bf16.mxu0 0
  %54 = vmatpush1.bf16.msra.mxu0 0
  %55 = vmatprep.subr.bf16.mxu0 0
  %56 = vmatpush1.bf16.msra.mxu0 0
  %57 = vmatprep.subr.bf16.mxu0 0
  %58 = vmatpush1.bf16.msra.mxu0 0
  %59 = vmatprep.subr.bf16.mxu0 0
  %60 = vmatpush1.bf16.msra.mxu0 0
  %61 = vmatprep.subr.bf16.mxu0 0
  %62 = vmatpush1.bf16.msra.mxu0 0
  %63 = vmatprep.subr.bf16.mxu0 0
  %64 = vmatpush1.bf16.msra.mxu0 0
  %65 = vmatprep.subr.bf16.mxu0 0
  %66 = vmatpush1.bf16.msra.mxu0 0
  %67 = vmatprep.subr.bf16.mxu0 0
  %68 = vmatpush1.bf16.msra.mxu0 0
  %69 = vmatprep.subr.bf16.mxu0 0
  %70 = vmatpush1.bf16.msra.mxu0 0
  %71 = vmatprep.subr.bf16.mxu0 0
  %72 = vmatpush1.bf16.msra.mxu0 0
  %73 = vmatprep.subr.bf16.mxu0 0
  %74 = vmatpush1.bf16.msra.mxu0 0
  %75 = vmatprep.subr.bf16.mxu0 0
  %76 = vmatpush1.bf16.msra.mxu0 0
  %77 = vmatprep.subr.bf16.mxu0 0
  %78 = vmatpush1.bf16.msra.mxu0 0
  %79 = vmatprep.mubr.bf16.mxu0 0
  %80 = vmatmul.mubr.bf16.gmra.mrb[0].mxu0 %v45
  %v81 = vpop.f32.mrb[0].mxu0
  %v82 = vadd.f32 0.0, %v81
  %v83 = vpop.f32.mrb[0].mxu0
  %v84 = vadd.f32 0.0, %v83
  %v85 = vpop.f32.mrb[0].mxu0
  %v86 = vpop.f32.mrb[0].mxu0
  %87 = vdwg.mxu0
  %88 = vmatprep.subr.bf16.mxu0 %v38
  %89 = vmatpush1.bf16.msra.mxu0 %v37
  %90 = vmatprep.subr.bf16.mxu0 0
  %91 = vmatpush1.bf16.msra.mxu0 0
  %92 = vmatprep.subr.bf16.mxu0 0
  %93 = vmatpush1.bf16.msra.mxu0 0
  %94 = vmatprep.subr.bf16.mxu0 0
  %95 = vmatpush1.bf16.msra.mxu0 0
  %96 = vmatprep.subr.bf16.mxu0 0
  %97 = vmatpush1.bf16.msra.mxu0 0
  %98 = vmatprep.subr.bf16.mxu0 0
  %99 = vmatpush1.bf16.msra.mxu0 0
  %100 = vmatprep.subr.bf16.mxu0 0
  %101 = vmatpush1.bf16.msra.mxu0 0
  %102 = vmatprep.subr.bf16.mxu0 0
  %103 = vmatpush1.bf16.msra.mxu0 0
  %104 = vmatprep.subr.bf16.mxu0 0
  %105 = vmatpush1.bf16.msra.mxu0 0
  %106 = vmatprep.subr.bf16.mxu0 0
  %107 = vmatpush1.bf16.msra.mxu0 0
  %108 = vmatprep.subr.bf16.mxu0 0
  %109 = vmatpush1.bf16.msra.mxu0 0
  %110 = vmatprep.subr.bf16.mxu0 0
  %111 = vmatpush1.bf16.msra.mxu0 0
  %112 = vmatprep.subr.bf16.mxu0 0
  %113 = vmatpush1.bf16.msra.mxu0 0
  %114 = vmatprep.subr.bf16.mxu0 0
  %115 = vmatpush1.bf16.msra.mxu0 0
  %116 = vmatprep.subr.bf16.mxu0 0
  %117 = vmatpush1.bf16.msra.mxu0 0
  %118 = vmatprep.subr.bf16.mxu0 0
  %119 = vmatpush1.bf16.msra.mxu0 0
  %120 = vmatprep.mubr.bf16.mxu0 0
  %121 = vmatmul.mubr.bf16.gmra.mrb[0].mxu0 %v45
  %v122 = vpop.f32.mrb[0].mxu0
  %v123 = vadd.f32 0.0, %v122
  %v124 = vpop.f32.mrb[0].mxu0
  %v125 = vadd.f32 0.0, %v124
  %v126 = vpop.f32.mrb[0].mxu0
  %v127 = vpop.f32.mrb[0].mxu0
  %128 = vdwg.mxu0
  %s129 = scalar_lea.vmem %s1, 4
  %v130 = vld [vmem:[%s129] sm:$0xf]
  %s131 = scalar_lea.vmem %s0, 32
  %v132 = vld [vmem:[%s131] sm:$0xff]
  %v133 = vld [vmem:[%s131 + $0x8] sm:$0xff]
  %v134 = vld [vmem:[%s131 + $0x10] sm:$0xff]
  %v135 = vld [vmem:[%s131 + $0x18] sm:$0xff]
  %v140 = vunpack.c.l.b16 %v132
  %v141 = vunpack.c.h.b16 %v132
  %v142 = vunpack.c.l.b16 %v133
  %v143 = vunpack.c.h.b16 %v133
  %v144 = vunpack.c.l.b16 %v134
  %v145 = vunpack.c.h.b16 %v134
  %v146 = vunpack.c.l.b16 %v135
  %v147 = vunpack.c.h.b16 %v135
  %v148 = vpack.c.b16 %v144, %v140
  %v149 = vpack.c.b16 %v145, %v141
  %v150 = vpack.c.b16 %v146, %v142
  %v151 = vpack.c.b16 %v147, %v143
  %v157 = vsel %vm43, %v130, 0
  %159 = vmatprep.subr.bf16.mxu0 %v149
  %160 = vmatpush1.bf16.msra.mxu0 %v148
  %161 = vmatprep.subr.bf16.mxu0 0
  %162 = vmatpush1.bf16.msra.mxu0 0
  %163 = vmatprep.subr.bf16.mxu0 0
  %164 = vmatpush1.bf16.msra.mxu0 0
  %165 = vmatprep.subr.bf16.mxu0 0
  %166 = vmatpush1.bf16.msra.mxu0 0
  %167 = vmatprep.subr.bf16.mxu0 0
  %168 = vmatpush1.bf16.msra.mxu0 0
  %169 = vmatprep.subr.bf16.mxu0 0
  %170 = vmatpush1.bf16.msra.mxu0 0
  %171 = vmatprep.subr.bf16.mxu0 0
  %172 = vmatpush1.bf16.msra.mxu0 0
  %173 = vmatprep.subr.bf16.mxu0 0
  %174 = vmatpush1.bf16.msra.mxu0 0
  %175 = vmatprep.subr.bf16.mxu0 0
  %176 = vmatpush1.bf16.msra.mxu0 0
  %177 = vmatprep.subr.bf16.mxu0 0
  %178 = vmatpush1.bf16.msra.mxu0 0
  %179 = vmatprep.subr.bf16.mxu0 0
  %180 = vmatpush1.bf16.msra.mxu0 0
  %181 = vmatprep.subr.bf16.mxu0 0
  %182 = vmatpush1.bf16.msra.mxu0 0
  %183 = vmatprep.subr.bf16.mxu0 0
  %184 = vmatpush1.bf16.msra.mxu0 0
  %185 = vmatprep.subr.bf16.mxu0 0
  %186 = vmatpush1.bf16.msra.mxu0 0
  %187 = vmatprep.subr.bf16.mxu0 0
  %188 = vmatpush1.bf16.msra.mxu0 0
  %189 = vmatprep.subr.bf16.mxu0 0
  %190 = vmatpush1.bf16.msra.mxu0 0
  %191 = vmatprep.mubr.bf16.mxu0 0
  %192 = vmatmul.mubr.bf16.gmra.mrb[0].mxu0 %v157
  %v193 = vpop.f32.mrb[0].mxu0
  %v194 = vadd.f32 0.0, %v193
  %v195 = vpop.f32.mrb[0].mxu0
  %v196 = vadd.f32 0.0, %v195
  %v197 = vpop.f32.mrb[0].mxu0
  %v198 = vpop.f32.mrb[0].mxu0
  %199 = vdwg.mxu0
  %200 = vmatprep.subr.bf16.mxu0 %v151
  %201 = vmatpush1.bf16.msra.mxu0 %v150
  %202 = vmatprep.subr.bf16.mxu0 0
  %203 = vmatpush1.bf16.msra.mxu0 0
  %204 = vmatprep.subr.bf16.mxu0 0
  %205 = vmatpush1.bf16.msra.mxu0 0
  %206 = vmatprep.subr.bf16.mxu0 0
  %207 = vmatpush1.bf16.msra.mxu0 0
  %208 = vmatprep.subr.bf16.mxu0 0
  %209 = vmatpush1.bf16.msra.mxu0 0
  %210 = vmatprep.subr.bf16.mxu0 0
  %211 = vmatpush1.bf16.msra.mxu0 0
  %212 = vmatprep.subr.bf16.mxu0 0
  %213 = vmatpush1.bf16.msra.mxu0 0
  %214 = vmatprep.subr.bf16.mxu0 0
  %215 = vmatpush1.bf16.msra.mxu0 0
  %216 = vmatprep.subr.bf16.mxu0 0
  %217 = vmatpush1.bf16.msra.mxu0 0
  %218 = vmatprep.subr.bf16.mxu0 0
  %219 = vmatpush1.bf16.msra.mxu0 0
  %220 = vmatprep.subr.bf16.mxu0 0
  %221 = vmatpush1.bf16.msra.mxu0 0
  %222 = vmatprep.subr.bf16.mxu0 0
  %223 = vmatpush1.bf16.msra.mxu0 0
  %224 = vmatprep.subr.bf16.mxu0 0
  %225 = vmatpush1.bf16.msra.mxu0 0
  %226 = vmatprep.subr.bf16.mxu0 0
  %227 = vmatpush1.bf16.msra.mxu0 0
  %228 = vmatprep.subr.bf16.mxu0 0
  %229 = vmatpush1.bf16.msra.mxu0 0
  %230 = vmatprep.subr.bf16.mxu0 0
  %231 = vmatpush1.bf16.msra.mxu0 0
  %232 = vmatprep.mubr.bf16.mxu0 0
  %233 = vmatmul.mubr.bf16.gmra.mrb[0].mxu0 %v157
  %v234 = vpop.f32.mrb[0].mxu0
  %v235 = vadd.f32 0.0, %v234
  %v236 = vpop.f32.mrb[0].mxu0
  %v237 = vadd.f32 0.0, %v236
  %v238 = vpop.f32.mrb[0].mxu0
  %v239 = vpop.f32.mrb[0].mxu0
  %240 = vdwg.mxu0
  %s241 = scalar_lea.vmem %s1, 8
  %v242 = vld [vmem:[%s241] sm:$0xf]
  %s243 = scalar_lea.vmem %s0, 64
  %v244 = vld [vmem:[%s243] sm:$0xff]
  %v245 = vld [vmem:[%s243 + $0x8] sm:$0xff]
  %v246 = vld [vmem:[%s243 + $0x10] sm:$0xff]
  %v247 = vld [vmem:[%s243 + $0x18] sm:$0xff]
  %v252 = vunpack.c.l.b16 %v244
  %v253 = vunpack.c.h.b16 %v244
  %v254 = vunpack.c.l.b16 %v245
  %v255 = vunpack.c.h.b16 %v245
  %v256 = vunpack.c.l.b16 %v246
  %v257 = vunpack.c.h.b16 %v246
  %v258 = vunpack.c.l.b16 %v247
  %v259 = vunpack.c.h.b16 %v247
  %v260 = vpack.c.b16 %v256, %v252
  %v261 = vpack.c.b16 %v257, %v253
  %v262 = vpack.c.b16 %v258, %v254
  %v263 = vpack.c.b16 %v259, %v255
  %v269 = vsel %vm43, %v242, 0
  %271 = vmatprep.subr.bf16.mxu0 %v261
  %272 = vmatpush1.bf16.msra.mxu0 %v260
  %273 = vmatprep.subr.bf16.mxu0 0
  %274 = vmatpush1.bf16.msra.mxu0 0
  %275 = vmatprep.subr.bf16.mxu0 0
  %276 = vmatpush1.bf16.msra.mxu0 0
  %277 = vmatprep.subr.bf16.mxu0 0
  %278 = vmatpush1.bf16.msra.mxu0 0
  %279 = vmatprep.subr.bf16.mxu0 0
  %280 = vmatpush1.bf16.msra.mxu0 0
  %281 = vmatprep.subr.bf16.mxu0 0
  %282 = vmatpush1.bf16.msra.mxu0 0
  %283 = vmatprep.subr.bf16.mxu0 0
  %284 = vmatpush1.bf16.msra.mxu0 0
  %285 = vmatprep.subr.bf16.mxu0 0
  %286 = vmatpush1.bf16.msra.mxu0 0
  %287 = vmatprep.subr.bf16.mxu0 0
  %288 = vmatpush1.bf16.msra.mxu0 0
  %289 = vmatprep.subr.bf16.mxu0 0
  %290 = vmatpush1.bf16.msra.mxu0 0
  %291 = vmatprep.subr.bf16.mxu0 0
  %292 = vmatpush1.bf16.msra.mxu0 0
  %293 = vmatprep.subr.bf16.mxu0 0
  %294 = vmatpush1.bf16.msra.mxu0 0
  %295 = vmatprep.subr.bf16.mxu0 0
  %296 = vmatpush1.bf16.msra.mxu0 0
  %297 = vmatprep.subr.bf16.mxu0 0
  %298 = vmatpush1.bf16.msra.mxu0 0
  %299 = vmatprep.subr.bf16.mxu0 0
  %300 = vmatpush1.bf16.msra.mxu0 0
  %301 = vmatprep.subr.bf16.mxu0 0
  %302 = vmatpush1.bf16.msra.mxu0 0
  %303 = vmatprep.mubr.bf16.mxu0 0
  %304 = vmatmul.mubr.bf16.gmra.mrb[0].mxu0 %v269
  %v305 = vpop.f32.mrb[0].mxu0
  %v306 = vadd.f32 0.0, %v305
  %v307 = vpop.f32.mrb[0].mxu0
  %v308 = vadd.f32 0.0, %v307
  %v309 = vpop.f32.mrb[0].mxu0
  %v310 = vpop.f32.mrb[0].mxu0
  %311 = vdwg.mxu0
  %312 = vmatprep.subr.bf16.mxu0 %v263
  %313 = vmatpush1.bf16.msra.mxu0 %v262
  %314 = vmatprep.subr.bf16.mxu0 0
  %315 = vmatpush1.bf16.msra.mxu0 0
  %316 = vmatprep.subr.bf16.mxu0 0
  %317 = vmatpush1.bf16.msra.mxu0 0
  %318 = vmatprep.subr.bf16.mxu0 0
  %319 = vmatpush1.bf16.msra.mxu0 0
  %320 = vmatprep.subr.bf16.mxu0 0
  %321 = vmatpush1.bf16.msra.mxu0 0
  %322 = vmatprep.subr.bf16.mxu0 0
  %323 = vmatpush1.bf16.msra.mxu0 0
  %324 = vmatprep.subr.bf16.mxu0 0
  %325 = vmatpush1.bf16.msra.mxu0 0
  %326 = vmatprep.subr.bf16.mxu0 0
  %327 = vmatpush1.bf16.msra.mxu0 0
  %328 = vmatprep.subr.bf16.mxu0 0
  %329 = vmatpush1.bf16.msra.mxu0 0
  %330 = vmatprep.subr.bf16.mxu0 0
  %331 = vmatpush1.bf16.msra.mxu0 0
  %332 = vmatprep.subr.bf16.mxu0 0
  %333 = vmatpush1.bf16.msra.mxu0 0
  %334 = vmatprep.subr.bf16.mxu0 0
  %335 = vmatpush1.bf16.msra.mxu0 0
  %336 = vmatprep.subr.bf16.mxu0 0
  %337 = vmatpush1.bf16.msra.mxu0 0
  %338 = vmatprep.subr.bf16.mxu0 0
  %339 = vmatpush1.bf16.msra.mxu0 0
  %340 = vmatprep.subr.bf16.mxu0 0
  %341 = vmatpush1.bf16.msra.mxu0 0
  %342 = vmatprep.subr.bf16.mxu0 0
  %343 = vmatpush1.bf16.msra.mxu0 0
  %344 = vmatprep.mubr.bf16.mxu0 0
  %345 = vmatmul.mubr.bf16.gmra.mrb[0].mxu0 %v269
  %v346 = vpop.f32.mrb[0].mxu0
  %v347 = vadd.f32 0.0, %v346
  %v348 = vpop.f32.mrb[0].mxu0
  %v349 = vadd.f32 0.0, %v348
  %v350 = vpop.f32.mrb[0].mxu0
  %v351 = vpop.f32.mrb[0].mxu0
  %352 = vdwg.mxu0
  %s353 = scalar_lea.vmem %s1, 12
  %v354 = vld [vmem:[%s353] sm:$0xf]
  %s355 = scalar_lea.vmem %s0, 96
  %v356 = vld [vmem:[%s355] sm:$0xff]
  %v357 = vld [vmem:[%s355 + $0x8] sm:$0xff]
  %v358 = vld [vmem:[%s355 + $0x10] sm:$0xff]
  %v359 = vld [vmem:[%s355 + $0x18] sm:$0xff]
  %v364 = vunpack.c.l.b16 %v356
  %v365 = vunpack.c.h.b16 %v356
  %v366 = vunpack.c.l.b16 %v357
  %v367 = vunpack.c.h.b16 %v357
  %v368 = vunpack.c.l.b16 %v358
  %v369 = vunpack.c.h.b16 %v358
  %v370 = vunpack.c.l.b16 %v359
  %v371 = vunpack.c.h.b16 %v359
  %v372 = vpack.c.b16 %v368, %v364
  %v373 = vpack.c.b16 %v369, %v365
  %v374 = vpack.c.b16 %v370, %v366
  %v375 = vpack.c.b16 %v371, %v367
  %v381 = vsel %vm43, %v354, 0
  %383 = vmatprep.subr.bf16.mxu0 %v373
  %384 = vmatpush1.bf16.msra.mxu0 %v372
  %385 = vmatprep.subr.bf16.mxu0 0
  %386 = vmatpush1.bf16.msra.mxu0 0
  %387 = vmatprep.subr.bf16.mxu0 0
  %388 = vmatpush1.bf16.msra.mxu0 0
  %389 = vmatprep.subr.bf16.mxu0 0
  %390 = vmatpush1.bf16.msra.mxu0 0
  %391 = vmatprep.subr.bf16.mxu0 0
  %392 = vmatpush1.bf16.msra.mxu0 0
  %393 = vmatprep.subr.bf16.mxu0 0
  %394 = vmatpush1.bf16.msra.mxu0 0
  %395 = vmatprep.subr.bf16.mxu0 0
  %396 = vmatpush1.bf16.msra.mxu0 0
  %397 = vmatprep.subr.bf16.mxu0 0
  %398 = vmatpush1.bf16.msra.mxu0 0
  %399 = vmatprep.subr.bf16.mxu0 0
  %400 = vmatpush1.bf16.msra.mxu0 0
  %401 = vmatprep.subr.bf16.mxu0 0
  %402 = vmatpush1.bf16.msra.mxu0 0
  %403 = vmatprep.subr.bf16.mxu0 0
  %404 = vmatpush1.bf16.msra.mxu0 0
  %405 = vmatprep.subr.bf16.mxu0 0
  %406 = vmatpush1.bf16.msra.mxu0 0
  %407 = vmatprep.subr.bf16.mxu0 0
  %408 = vmatpush1.bf16.msra.mxu0 0
  %409 = vmatprep.subr.bf16.mxu0 0
  %410 = vmatpush1.bf16.msra.mxu0 0
  %411 = vmatprep.subr.bf16.mxu0 0
  %412 = vmatpush1.bf16.msra.mxu0 0
  %413 = vmatprep.subr.bf16.mxu0 0
  %414 = vmatpush1.bf16.msra.mxu0 0
  %415 = vmatprep.mubr.bf16.mxu0 0
  %416 = vmatmul.mubr.bf16.gmra.mrb[0].mxu0 %v381
  %v417 = vpop.f32.mrb[0].mxu0
  %v418 = vadd.f32 0.0, %v417
  %v419 = vpop.f32.mrb[0].mxu0
  %v420 = vadd.f32 0.0, %v419
  %v421 = vpop.f32.mrb[0].mxu0
  %v422 = vpop.f32.mrb[0].mxu0
  %423 = vdwg.mxu0
  %424 = vmatprep.subr.bf16.mxu0 %v375
  %425 = vmatpush1.bf16.msra.mxu0 %v374
  %426 = vmatprep.subr.bf16.mxu0 0
  %427 = vmatpush1.bf16.msra.mxu0 0
  %428 = vmatprep.subr.bf16.mxu0 0
  %429 = vmatpush1.bf16.msra.mxu0 0
  %430 = vmatprep.subr.bf16.mxu0 0
  %431 = vmatpush1.bf16.msra.mxu0 0
  %432 = vmatprep.subr.bf16.mxu0 0
  %433 = vmatpush1.bf16.msra.mxu0 0
  %434 = vmatprep.subr.bf16.mxu0 0
  %435 = vmatpush1.bf16.msra.mxu0 0
  %436 = vmatprep.subr.bf16.mxu0 0
  %437 = vmatpush1.bf16.msra.mxu0 0
  %438 = vmatprep.subr.bf16.mxu0 0
  %439 = vmatpush1.bf16.msra.mxu0 0
  %440 = vmatprep.subr.bf16.mxu0 0
  %441 = vmatpush1.bf16.msra.mxu0 0
  %442 = vmatprep.subr.bf16.mxu0 0
  %443 = vmatpush1.bf16.msra.mxu0 0
  %444 = vmatprep.subr.bf16.mxu0 0
  %445 = vmatpush1.bf16.msra.mxu0 0
  %446 = vmatprep.subr.bf16.mxu0 0
  %447 = vmatpush1.bf16.msra.mxu0 0
  %448 = vmatprep.subr.bf16.mxu0 0
  %449 = vmatpush1.bf16.msra.mxu0 0
  %450 = vmatprep.subr.bf16.mxu0 0
  %451 = vmatpush1.bf16.msra.mxu0 0
  %452 = vmatprep.subr.bf16.mxu0 0
  %453 = vmatpush1.bf16.msra.mxu0 0
  %454 = vmatprep.subr.bf16.mxu0 0
  %455 = vmatpush1.bf16.msra.mxu0 0
  %456 = vmatprep.mubr.bf16.mxu0 0
  %457 = vmatmul.mubr.bf16.gmra.mrb[0].mxu0 %v381
  %v458 = vpop.f32.mrb[0].mxu0
  %v459 = vadd.f32 0.0, %v458
  %v460 = vpop.f32.mrb[0].mxu0
  %v461 = vadd.f32 0.0, %v460
  %v462 = vpop.f32.mrb[0].mxu0
  %v463 = vpop.f32.mrb[0].mxu0
  %464 = vdwg.mxu0
  %v465 = vadd.f32 %v82, %v84
  %v466 = vadd.f32 %v465, %v123
  %v467 = vadd.f32 %v466, %v125
  %468 = vadd.xlane.f32.xlu0 %v467
  %v469 = vpop.xlane.xlu0 %468
  %v470 = vmul.f32 %v82, %v82
  %v471 = vmul.f32 %v84, %v84
  %v472 = vmul.f32 %v123, %v123
  %v473 = vmul.f32 %v125, %v125
  %v474 = vadd.f32 %v470, %v471
  %v475 = vadd.f32 %v474, %v472
  %v476 = vadd.f32 %v475, %v473
  %477 = vadd.xlane.f32.xlu0 %v476
  %v478 = vpop.xlane.xlu0 %477
  %v479 = vadd.f32 %v194, %v196
  %v480 = vadd.f32 %v479, %v235
  %v481 = vadd.f32 %v480, %v237
  %482 = vadd.xlane.f32.xlu0 %v481
  %v483 = vpop.xlane.xlu0 %482
  %v484 = vadd.f32 %v469, %v483
  %v485 = vmul.f32 %v194, %v194
  %v486 = vmul.f32 %v196, %v196
  %v487 = vmul.f32 %v235, %v235
  %v488 = vmul.f32 %v237, %v237
  %v489 = vadd.f32 %v485, %v486
  %v490 = vadd.f32 %v489, %v487
  %v491 = vadd.f32 %v490, %v488
  %492 = vadd.xlane.f32.xlu0 %v491
  %v493 = vpop.xlane.xlu0 %492
  %v494 = vadd.f32 %v478, %v493
  %v495 = vadd.f32 %v306, %v308
  %v496 = vadd.f32 %v495, %v347
  %v497 = vadd.f32 %v496, %v349
  %498 = vadd.xlane.f32.xlu0 %v497
  %v499 = vpop.xlane.xlu0 %498
  %v500 = vadd.f32 %v484, %v499
  %v501 = vmul.f32 %v306, %v306
  %v502 = vmul.f32 %v308, %v308
  %v503 = vmul.f32 %v347, %v347
  %v504 = vmul.f32 %v349, %v349
  %v505 = vadd.f32 %v501, %v502
  %v506 = vadd.f32 %v505, %v503
  %v507 = vadd.f32 %v506, %v504
  %508 = vadd.xlane.f32.xlu0 %v507
  %v509 = vpop.xlane.xlu0 %508
  %v510 = vadd.f32 %v494, %v509
  %v511 = vadd.f32 %v418, %v420
  %v512 = vadd.f32 %v511, %v459
  %v513 = vadd.f32 %v512, %v461
  %514 = vadd.xlane.f32.xlu0 %v513
  %v515 = vpop.xlane.xlu0 %514
  %v516 = vadd.f32 %v500, %v515
  %v517 = vmul.f32 %v418, %v418
  %v518 = vmul.f32 %v420, %v420
  %v519 = vmul.f32 %v459, %v459
  %v520 = vmul.f32 %v461, %v461
  %v521 = vadd.f32 %v517, %v518
  %v522 = vadd.f32 %v521, %v519
  %v523 = vadd.f32 %v522, %v520
  %524 = vadd.xlane.f32.xlu0 %v523
  %v525 = vpop.xlane.xlu0 %524
  %v526 = vadd.f32 %v510, %v525
  %v527 = vmul.f32 %v516, 0.00048828125
  %v528 = vmul.f32 %v526, 0.00048828125
  %v529 = vmul.f32 %v527, %v527
  %v530 = vsub.f32 %v528, %v529
  %v531 = vmax.f32 %v530, 0.0
  %v532 = vld [vmem:[%s2] sm:$0xff]
  %v533 = vadd.f32 %v531, 1e-05
  %v534 = vrsqrt.pop %v533
  %v535 = vmul.f32 %v532, %v534
  %v536 = vld [vmem:[%s3] sm:$0xff]
  %v537 = vmul.f32 %v527, %v535
  %v538 = vsub.f32 %v536, %v537
  %540 = vset.pattern.permute.xlu0 0
  %541 = vperm.xlu0 %540, %v535
  %v542 = vpop.permute.xlu0 %541
  %v544 = vmul.f32 %v82, %v542
  %v545 = vmul.f32 %v84, %v542
  %v546 = vmul.f32 %v123, %v542
  %v547 = vmul.f32 %v125, %v542
  %549 = vset.pattern.permute.xlu0 0
  %550 = vperm.xlu0 %549, %v538
  %v551 = vpop.permute.xlu0 %550
  %v553 = vadd.f32 %v544, %v551
  %v554 = vadd.f32 %v545, %v551
  %v555 = vadd.f32 %v546, %v551
  %v556 = vadd.f32 %v547, %v551
  %v557 = vmax.f32 %v553, 0.0
  %v558 = vmax.f32 %v554, 0.0
  %v559 = vmax.f32 %v555, 0.0
  %v560 = vmax.f32 %v556, 0.0
  %561 = vst [vmem:[%s4] sm:$0xff] %v557
  %562 = vst [vmem:[%s4 + $0x8] sm:$0xff] %v558
  %563 = vst [vmem:[%s4 + $0x10] sm:$0xff] %v559
  %564 = vst [vmem:[%s4 + $0x18] sm:$0xff] %v560
  %v565 = vmul.f32 %v194, %v542
  %v566 = vmul.f32 %v196, %v542
  %v567 = vmul.f32 %v235, %v542
  %v568 = vmul.f32 %v237, %v542
  %v569 = vadd.f32 %v565, %v551
  %v570 = vadd.f32 %v566, %v551
  %v571 = vadd.f32 %v567, %v551
  %v572 = vadd.f32 %v568, %v551
  %v573 = vmax.f32 %v569, 0.0
  %v574 = vmax.f32 %v570, 0.0
  %v575 = vmax.f32 %v571, 0.0
  %v576 = vmax.f32 %v572, 0.0
  %577 = vst [vmem:[%s4 + $0x20] sm:$0xff] %v573
  %578 = vst [vmem:[%s4 + $0x28] sm:$0xff] %v574
  %579 = vst [vmem:[%s4 + $0x30] sm:$0xff] %v575
  %580 = vst [vmem:[%s4 + $0x38] sm:$0xff] %v576
  %v581 = vmul.f32 %v306, %v542
  %v582 = vmul.f32 %v308, %v542
  %v583 = vmul.f32 %v347, %v542
  %v584 = vmul.f32 %v349, %v542
  %v585 = vadd.f32 %v581, %v551
  %v586 = vadd.f32 %v582, %v551
  %v587 = vadd.f32 %v583, %v551
  %v588 = vadd.f32 %v584, %v551
  %v589 = vmax.f32 %v585, 0.0
  %v590 = vmax.f32 %v586, 0.0
  %v591 = vmax.f32 %v587, 0.0
  %v592 = vmax.f32 %v588, 0.0
  %593 = vst [vmem:[%s4 + $0x40] sm:$0xff] %v589
  %594 = vst [vmem:[%s4 + $0x48] sm:$0xff] %v590
  %595 = vst [vmem:[%s4 + $0x50] sm:$0xff] %v591
  %596 = vst [vmem:[%s4 + $0x58] sm:$0xff] %v592
  %v597 = vmul.f32 %v418, %v542
  %v598 = vmul.f32 %v420, %v542
  %v599 = vmul.f32 %v459, %v542
  %v600 = vmul.f32 %v461, %v542
  %v601 = vadd.f32 %v597, %v551
  %v602 = vadd.f32 %v598, %v551
  %v603 = vadd.f32 %v599, %v551
  %v604 = vadd.f32 %v600, %v551
  %v605 = vmax.f32 %v601, 0.0
  %v606 = vmax.f32 %v602, 0.0
  %v607 = vmax.f32 %v603, 0.0
  %v608 = vmax.f32 %v604, 0.0
  %609 = vst [vmem:[%s4 + $0x60] sm:$0xff] %v605
  %610 = vst [vmem:[%s4 + $0x68] sm:$0xff] %v606
  %611 = vst [vmem:[%s4 + $0x70] sm:$0xff] %v607
  %612 = vst [vmem:[%s4 + $0x78] sm:$0xff] %v608
  // Predicated region
  $region18: #{decoding_block_forward.1} parent=0 // pred_check
    _
  $region19: #{decoding_block_forward.1} parent=0 // pred_check_branch
    %614 = sbr.rel (0) target = $region21
  $region20: #{decoding_block_forward.1} parent=0 // pred_region
    _
  $region21: #{decoding_block_forward.1} parent=0 // pred_fallthru
    _
  // Predicated region
  $region22: #{decoding_block_forward.1} parent=0 // pred_check
    _
  $region23: #{decoding_block_forward.1} parent=0 // pred_check_branch
    %616 = sbr.rel (0) target = $region25
  $region24: #{decoding_block_forward.1} parent=0 // pred_region
    _
  $region25: #{decoding_block_forward.1} parent=0 // pred_fallthru
    _

</llo_original>
